<compile_context>
chip_gen: v6e
topology: v6e:2x2x1
jax: 0.10.0
libtpu: 0.0.40
codegen_flags: <defaults>
</compile_context>

<pallas_src>
import functools

import jax
import jax.numpy as jnp
from jax.experimental import pallas as pl
from jax.experimental.pallas import tpu as pltpu

_MIB = 1024 * 1024


def _logits_kernel(h_ref, w_ref, o_ref, *, logit_scale, softcap):
    """One (vocab, token) tile: o[TT, TV] = softcap(scale * (h[TT,D] @ w[TV,D]^T))."""
    # Cast the hidden tile to the weight dtype in-kernel (mirrors
    # `hidden_states.to(lm_head.weight.dtype)` without an extra XLA op).
    h = h_ref[...].astype(w_ref.dtype)
    acc = jax.lax.dot_general(
        h, w_ref[...],
        dimension_numbers=(((1,), (1,)), ((), ())),   # contract hidden dim
        preferred_element_type=jnp.float32,
    )
    # TODO(synk): for v7x prefill (MXU-bound) consider a static [D, V] weight
    # pre-transpose at load time; everywhere else the kernel is weight-stream
    # bound and the contiguous [V, D] row DMA wins.
    if logit_scale is not None:
        acc = acc * jnp.float32(logit_scale)
    if softcap is not None:
        # Identical to the Triton fused_softcap (exp(2x)-1)/(exp(2x)+1) but a
        # single EUP tanh and numerically safe for |x| >> softcap.
        acc = jnp.float32(softcap) * jnp.tanh(acc * jnp.float32(1.0 / softcap))
    o_ref[...] = acc


def _round_up(x, m):
    return ((x + m - 1) // m) * m


def _vmem_capacity_bytes():
    try:
        return int(pltpu.get_tpu_info().vmem_capacity_bytes)
    except Exception:
        return 128 * _MIB  # conservative default (v5e/v6e size)


def get_logits_pallas(hidden_states, lm_head_weight, *, vocab_size,
                      logit_scale=None, final_logit_softcapping=None,
                      max_vocab_tile=2048, token_tile=256, weight_buffers=3):
    """hidden_states: [T, D], lm_head_weight: [V_padded, D] -> [T, vocab_size] f32."""
    T, D = hidden_states.shape
    V, D2 = lm_head_weight.shape
    assert D == D2
    assert vocab_size <= V

    w_bytes = jnp.dtype(lm_head_weight.dtype).itemsize
    h_bytes = jnp.dtype(hidden_states.dtype).itemsize

    # Token tiling: decode keeps the whole (small) batch resident; prefill /
    # return-logprob calls tile at `token_tile` rows (fills the 256-row MXU).
    tt = T if T <= token_tile else token_tile

    # Hardware-aware VMEM budgeting (64 MiB/TC on v7x, 128 MiB on v5e/v6e).
    vmem_cap = _vmem_capacity_bytes()
    budget = int(0.70 * vmem_cap)
    limit_cap = int(0.85 * vmem_cap)

    def vmem_estimate(vt, n_w_buf):
        return (2 * tt * D * h_bytes        # hidden tile (double-buffered, input dtype)
                + n_w_buf * vt * D * w_bytes  # weight tile (n-deep buffered)
                + 2 * tt * vt * 4)          # f32 output tile (double-buffered)

    # Vocab tile: lane-aligned, grown toward the budget (bigger weight DMAs,
    # fewer grid steps on 128 MiB parts), capped so it also fits v7x.
    max_tile = max(128, min(_round_up(max_vocab_tile, 128),
                            _round_up(vocab_size, 128)))
    tile = 128
    while tile + 128 <= max_tile and vmem_estimate(tile + 128, weight_buffers) <= budget:
        tile += 128

    # Swapped grid: vocab OUTER (weight tile resident across all token tiles ->
    # lm_head weight streams from HBM once per call; vocab is the
    # megacore-sharded axis on v7x), token INNER.  Ragged last vocab / token
    # tiles are masked by Pallas on store -> no post-kernel [:, :vocab] copy.
    grid = (pl.cdiv(vocab_size, tile), pl.cdiv(T, tt))

    softcap = (final_logit_softcapping
               if (final_logit_softcapping is not None
                   and final_logit_softcapping > 0) else None)
    kernel = functools.partial(_logits_kernel,
                               logit_scale=logit_scale, softcap=softcap)

    def build(n_w_buf):
        w_spec_kwargs = {}
        if n_w_buf != 2:
            w_spec_kwargs = dict(pipeline_mode=pl.Buffered(n_w_buf))
        vmem_limit = int(max(32 * _MIB,
                             min(limit_cap,
                                 vmem_estimate(tile, n_w_buf) + 8 * _MIB)))
        return pl.pallas_call(
            kernel,
            out_shape=jax.ShapeDtypeStruct((T, vocab_size), jnp.float32),
            grid_spec=pltpu.PrefetchScalarGridSpec(
                num_scalar_prefetch=0,
                grid=grid,
                in_specs=[
                    pl.BlockSpec((tt, D), lambda j, i: (i, 0)),     # hidden rows
                    pl.BlockSpec((tile, D), lambda j, i: (j, 0),    # vocab tile of W
                                 **w_spec_kwargs),
                ],
                out_specs=pl.BlockSpec((tt, tile), lambda j, i: (i, j)),
            ),
            compiler_params=pltpu.CompilerParams(
                dimension_semantics=("parallel", "parallel"),
                vmem_limit_bytes=vmem_limit,
            ),
        )

    try:
        return build(weight_buffers)(hidden_states, lm_head_weight)
    except Exception:
        # Fallback: if pipeline_mode=Buffered(n) is rejected by this toolchain,
        # default double-buffering is functionally identical.
        return build(2)(hidden_states, lm_head_weight)


class LogitsProcessorPallas:
    """Minimal JAX/Pallas port of LogitsProcessor (sampled-logits path).

    Only the device hot path (_get_logits) runs as a Pallas kernel.
    # TODO(synk): extend_return_logprob path (log_softmax + top-k / token-id lists)
    # TODO(synk): tensor_model_parallel_all_gather (single-device demo)
    # TODO(synk): optional embedding_bias / quantized lm_head apply path
    """

    def __init__(self, vocab_size, logit_scale=None, final_logit_softcapping=None):
        self.vocab_size = vocab_size
        self.logit_scale = logit_scale
        self.final_logit_softcapping = final_logit_softcapping
        if (self.final_logit_softcapping is not None
                and self.final_logit_softcapping < 0):
            self.final_logit_softcapping = None

    def forward(self, hidden_states, lm_head_weight):
        # decode / idle mode: pruned_states = hidden_states, sample_indices = None
        sampled_logits = get_logits_pallas(
            hidden_states, lm_head_weight,
            vocab_size=self.vocab_size,
            logit_scale=self.logit_scale,
            final_logit_softcapping=self.final_logit_softcapping,
        )
        return {"next_token_logits": sampled_logits, "hidden_states": None}


def _reference(hidden_states, lm_head_weight, vocab_size, logit_scale, softcap):
    h = hidden_states.astype(lm_head_weight.dtype)
    logits = jnp.dot(h, lm_head_weight.T, preferred_element_type=jnp.float32)
    if logit_scale is not None:
        logits = logits * jnp.float32(logit_scale)
    logits = logits[:, :vocab_size].astype(jnp.float32)
    if softcap is not None and softcap > 0:
        logits = softcap * jnp.tanh(logits / softcap)
    return logits


if __name__ == "__main__":
    VOCAB_SIZE = 256
    D = 32
    V_PADDED = 256
    LOGIT_SCALE = 0.5
    SOFTCAP = 30.0

    key = jax.random.PRNGKey(0)
    k_h, k_w, k_h2 = jax.random.split(key, 3)
    lm_head_weight = (jax.random.normal(k_w, (V_PADDED, D), dtype=jnp.float32)
                      * 0.05).astype(jnp.bfloat16)

    proc = LogitsProcessorPallas(vocab_size=VOCAB_SIZE,
                                 logit_scale=LOGIT_SCALE,
                                 final_logit_softcapping=SOFTCAP)

    # Case 1: decode-sized batch (single resident token block).
    T1 = 8
    hidden1 = jax.random.normal(k_h, (T1, D), dtype=jnp.float32)
    out1 = proc.forward(hidden1, lm_head_weight)
    logits1 = jax.block_until_ready(out1["next_token_logits"])
    ref1 = _reference(hidden1, lm_head_weight, VOCAB_SIZE, LOGIT_SCALE, SOFTCAP)
    assert logits1.shape == (T1, VOCAB_SIZE)
    assert logits1.dtype == jnp.float32
    assert jnp.allclose(logits1, ref1, rtol=2e-2, atol=2e-2), (
        float(jnp.max(jnp.abs(logits1 - ref1))))

    # Case 2: prefill-sized batch exercising the token-tiled (inner) axis,
    # vocab-outer grid keeps each weight tile resident across both token tiles.
    T2 = 512
    hidden2 = jax.random.normal(k_h2, (T2, D), dtype=jnp.float32)
    out2 = proc.forward(hidden2, lm_head_weight)
    logits2 = jax.block_until_ready(out2["next_token_logits"])
    ref2 = _reference(hidden2, lm_head_weight, VOCAB_SIZE, LOGIT_SCALE, SOFTCAP)
    assert logits2.shape == (T2, VOCAB_SIZE)
    assert jnp.allclose(logits2, ref2, rtol=2e-2, atol=2e-2), (
        float(jnp.max(jnp.abs(logits2 - ref2))))

    # Case 3 (correctness concern from review): vocab_size NOT a multiple of
    # the vocab tile, softcap enabled -> ragged last vocab tile is masked on
    # store, padded weight rows never leak into the output.
    VOCAB3 = 200
    logits3 = jax.block_until_ready(get_logits_pallas(
        hidden1, lm_head_weight, vocab_size=VOCAB3,
        logit_scale=LOGIT_SCALE, final_logit_softcapping=SOFTCAP,
        max_vocab_tile=128))
    ref3 = _reference(hidden1, lm_head_weight, VOCAB3, LOGIT_SCALE, SOFTCAP)
    assert logits3.shape == (T1, VOCAB3)
    assert jnp.all(jnp.isfinite(logits3))
    assert jnp.allclose(logits3, ref3, rtol=2e-2, atol=2e-2), (
        float(jnp.max(jnp.abs(logits3 - ref3))))

    print("KERNEL_OK")
</pallas_src>

<mosaic_0001>
module attributes {stable_mosaic.version = 11 : i64} {
  func.func @_logits_kernel(%arg0: i32, %arg1: i32, %arg2: memref<8x32xf32, #tpu.memory_space<vmem>>, %arg3: memref<256x32xbf16, #tpu.memory_space<vmem>>, %arg4: memref<8x256xf32, #tpu.memory_space<vmem>>) attributes {dimension_semantics = [#tpu.dimension_semantics<parallel>, #tpu.dimension_semantics<parallel>], iteration_bounds = array<i64: 1, 1>, scalar_prefetch = 0 : i64, scratch_operands = 0 : i64, tpu.core_type = #tpu.core_type<tc>, window_params = [{transform_indices = @transform_0, window_bounds = array<i64: 8, 32>}, {transform_indices = @transform_1, window_bounds = array<i64: 256, 32>}, {transform_indices = @transform_2, window_bounds = array<i64: 8, 256>}]} {
    %c0 = arith.constant 0 : index
    %c0_0 = arith.constant 0 : index
    %0 = vector.load %arg2[%c0, %c0_0] : memref<8x32xf32, #tpu.memory_space<vmem>>, vector<8x32xf32>
    %1 = arith.truncf %0 : vector<8x32xf32> to vector<8x32xbf16>
    %c0_1 = arith.constant 0 : index
    %c0_2 = arith.constant 0 : index
    %2 = vector.load %arg3[%c0_1, %c0_2] : memref<256x32xbf16, #tpu.memory_space<vmem>>, vector<256x32xbf16>
    %cst = arith.constant dense<0.000000e+00> : vector<8x256xf32>
    %3 = tpu.matmul %1, %2, %cst {dimension_numbers = #tpu.dot_dimension_numbers<[1], [1], [0], [0], [0, 0, 1, 0], [], []>} : vector<8x32xbf16>, vector<256x32xbf16>, vector<8x256xf32> -> vector<8x256xf32>
    %cst_3 = arith.constant 5.000000e-01 : f32
    %4 = vector.broadcast %cst_3 : f32 to vector<8x256xf32>
    %5 = arith.mulf %3, %4 : vector<8x256xf32>
    %cst_4 = arith.constant 0.0333333351 : f32
    %6 = vector.broadcast %cst_4 : f32 to vector<8x256xf32>
    %7 = arith.mulf %5, %6 : vector<8x256xf32>
    %8 = math.tanh %7 : vector<8x256xf32>
    %cst_5 = arith.constant 3.000000e+01 : f32
    %9 = vector.broadcast %cst_5 : f32 to vector<8x256xf32>
    %10 = arith.mulf %9, %8 : vector<8x256xf32>
    %c0_6 = arith.constant 0 : index
    %c0_7 = arith.constant 0 : index
    %11 = vector.load %arg4[%c0_6, %c0_7] : memref<8x256xf32, #tpu.memory_space<vmem>>, vector<8x256xf32>
    tpu.vector_store %arg4[%c0_6, %c0_7], %10 {strides = array<i32>} : memref<8x256xf32, #tpu.memory_space<vmem>>, vector<8x256xf32>,
    return
  }
  func.func @transform_0(%arg0: i32, %arg1: i32) -> (i32, i32) {
    %c0_i32 = arith.constant 0 : i32
    %c0_i32_0 = arith.constant 0 : i32
    return %arg1, %c0_i32 : i32, i32
  }
  func.func @transform_1(%arg0: i32, %arg1: i32) -> (i32, i32) {
    %c0_i32 = arith.constant 0 : i32
    %c0_i32_0 = arith.constant 0 : i32
    return %arg0, %c0_i32 : i32, i32
  }
  func.func @transform_2(%arg0: i32, %arg1: i32) -> (i32, i32) {
    %c0_i32 = arith.constant 0 : i32
    return %arg1, %arg0 : i32, i32
  }
}

</mosaic_0001>

<llo_original>
// kernel: tpu_custom_call.1
$region0: #{tpu_custom_call.1}
  #allocation0 [shape = 'u32[]', space=smem, size = 0x4, offset = 0x4, fixed_abs, tag = 'smem constant byte address 0x4 - core index']
  #allocation1 [shape = 'u32[144,128]{1,0:T(1,128)}', space=vmem, size = 0x12000, scoped, tag = 'internal scratch']
  %s0 = inlined_call_operand.vmem [shape: f32[8,32], index: 0, kind: input, shape index: {}]
  %s1 = inlined_call_operand.vmem [shape: bf16[256,32], index: 1, kind: input, shape index: {}]
  %s2 = inlined_call_operand.hbm [shape: f32[8,256], index: 2, kind: output, shape index: {}]
  %s3 = sld [smem:[#allocation0]]
  $region18: #{tpu_custom_call.1} parent=0
    _
  %s5 = ssub.s32 1, %s3
  %s6 = scalar_select 0, %s5, %s3
  $region1: #{tpu_custom_call.1} parent=0
    #allocation2 [shape = 'u8[8192]{0}', space=vmem, size = 0x2000, scoped, tag = 'output window, operand 0, single buffered']
    #allocation3 [shape = 's32[1]{0}', space=sflag, size = 0x4, scoped, tag = 'scoped memory for tpu_custom_call.1']
    %7 = vsyncpa [#allocation3], 0
    // Predicated region
    $region2: #{tpu_custom_call.1} parent=1 // pred_check
      _
    $region3: #{tpu_custom_call.1} parent=1 // pred_check_branch
      %9 = sbr.rel (0) target = $region5
    $region4: #{tpu_custom_call.1} parent=1 // pred_region
      _
    $region5: #{tpu_custom_call.1} parent=1 // pred_fallthru
      _
    // Predicated region
    $region6: #{tpu_custom_call.1} parent=1 // pred_check
      _
    $region7: #{tpu_custom_call.1} parent=1 // pred_check_branch
      %11 = sbr.rel (0) target = $region9
    $region8: #{tpu_custom_call.1} parent=1 // pred_region
      _
    $region9: #{tpu_custom_call.1} parent=1 // pred_fallthru
      _
    %v13 = vld [vmem:[%s0] sm:$0xff]
    %v14 = vpack.c.bf16 %v13, %v13
    %v15 = vld [vmem:[%s1] sm:$0xf]
    %v16 = vld [vmem:[%s1 + $0x4] sm:$0xf]
    %v17 = vld [vmem:[%s1 + $0x8] sm:$0xf]
    %v18 = vld [vmem:[%s1 + $0xc] sm:$0xf]
    %v19 = vld [vmem:[%s1 + $0x10] sm:$0xf]
    %v20 = vld [vmem:[%s1 + $0x14] sm:$0xf]
    %v21 = vld [vmem:[%s1 + $0x18] sm:$0xf]
    %v22 = vld [vmem:[%s1 + $0x1c] sm:$0xf]
    %v23 = vld [vmem:[%s1 + $0x20] sm:$0xf]
    %v24 = vld [vmem:[%s1 + $0x24] sm:$0xf]
    %v25 = vld [vmem:[%s1 + $0x28] sm:$0xf]
    %v26 = vld [vmem:[%s1 + $0x2c] sm:$0xf]
    %v27 = vld [vmem:[%s1 + $0x30] sm:$0xf]
    %v28 = vld [vmem:[%s1 + $0x34] sm:$0xf]
    %v29 = vld [vmem:[%s1 + $0x38] sm:$0xf]
    %v30 = vld [vmem:[%s1 + $0x3c] sm:$0xf]
    %v31 = vld [vmem:[%s1 + $0x40] sm:$0xf]
    %v32 = vld [vmem:[%s1 + $0x44] sm:$0xf]
    %v33 = vld [vmem:[%s1 + $0x48] sm:$0xf]
    %v34 = vld [vmem:[%s1 + $0x4c] sm:$0xf]
    %v35 = vld [vmem:[%s1 + $0x50] sm:$0xf]
    %v36 = vld [vmem:[%s1 + $0x54] sm:$0xf]
    %v37 = vld [vmem:[%s1 + $0x58] sm:$0xf]
    %v38 = vld [vmem:[%s1 + $0x5c] sm:$0xf]
    %v39 = vld [vmem:[%s1 + $0x60] sm:$0xf]
    %v40 = vld [vmem:[%s1 + $0x64] sm:$0xf]
    %v41 = vld [vmem:[%s1 + $0x68] sm:$0xf]
    %v42 = vld [vmem:[%s1 + $0x6c] sm:$0xf]
    %v43 = vld [vmem:[%s1 + $0x70] sm:$0xf]
    %v44 = vld [vmem:[%s1 + $0x74] sm:$0xf]
    %v45 = vld [vmem:[%s1 + $0x78] sm:$0xf]
    %v46 = vld [vmem:[%s1 + $0x7c] sm:$0xf]
    %v79 = vunpack.c.l.b16 %v15
    %v80 = vunpack.c.l.b16 %v16
    %v81 = vunpack.c.l.b16 %v17
    %v82 = vunpack.c.l.b16 %v18
    %v83 = vunpack.c.l.b16 %v19
    %v84 = vunpack.c.l.b16 %v20
    %v85 = vunpack.c.l.b16 %v21
    %v86 = vunpack.c.l.b16 %v22
    %v87 = vunpack.c.l.b16 %v23
    %v88 = vunpack.c.l.b16 %v24
    %v89 = vunpack.c.l.b16 %v25
    %v90 = vunpack.c.l.b16 %v26
    %v91 = vunpack.c.l.b16 %v27
    %v92 = vunpack.c.l.b16 %v28
    %v93 = vunpack.c.l.b16 %v29
    %v94 = vunpack.c.l.b16 %v30
    %v95 = vunpack.c.l.b16 %v31
    %v96 = vunpack.c.l.b16 %v32
    %v97 = vunpack.c.l.b16 %v33
    %v98 = vunpack.c.l.b16 %v34
    %v99 = vunpack.c.l.b16 %v35
    %v100 = vunpack.c.l.b16 %v36
    %v101 = vunpack.c.l.b16 %v37
    %v102 = vunpack.c.l.b16 %v38
    %v103 = vunpack.c.l.b16 %v39
    %v104 = vunpack.c.l.b16 %v40
    %v105 = vunpack.c.l.b16 %v41
    %v106 = vunpack.c.l.b16 %v42
    %v107 = vunpack.c.l.b16 %v43
    %v108 = vunpack.c.l.b16 %v44
    %v109 = vunpack.c.l.b16 %v45
    %v110 = vunpack.c.l.b16 %v46
    %v111 = vpack.c.b16 %v80, %v79
    %v112 = vpack.c.b16 %v82, %v81
    %v113 = vpack.c.b16 %v84, %v83
    %v114 = vpack.c.b16 %v86, %v85
    %v115 = vpack.c.b16 %v88, %v87
    %v116 = vpack.c.b16 %v90, %v89
    %v117 = vpack.c.b16 %v92, %v91
    %v118 = vpack.c.b16 %v94, %v93
    %v119 = vpack.c.b16 %v96, %v95
    %v120 = vpack.c.b16 %v98, %v97
    %v121 = vpack.c.b16 %v100, %v99
    %v122 = vpack.c.b16 %v102, %v101
    %v123 = vpack.c.b16 %v104, %v103
    %v124 = vpack.c.b16 %v106, %v105
    %v125 = vpack.c.b16 %v108, %v107
    %v126 = vpack.c.b16 %v110, %v109
    %vm127 = vcmask 261120
    %v129 = vsel %vm127, %v14, 0
    %v132 = vsel %vm127, %v111, 0
    %v135 = vsel %vm127, %v112, 0
    %v138 = vsel %vm127, %v113, 0
    %v141 = vsel %vm127, %v114, 0
    %v144 = vsel %vm127, %v115, 0
    %v147 = vsel %vm127, %v116, 0
    %v150 = vsel %vm127, %v117, 0
    %v153 = vsel %vm127, %v118, 0
    %v156 = vsel %vm127, %v119, 0
    %v159 = vsel %vm127, %v120, 0
    %v162 = vsel %vm127, %v121, 0
    %v165 = vsel %vm127, %v122, 0
    %v168 = vsel %vm127, %v123, 0
    %v171 = vsel %vm127, %v124, 0
    %v174 = vsel %vm127, %v125, 0
    %v177 = vsel %vm127, %v126, 0
    %179 = vmatprep.subr.bf16.mxu0 0
    %180 = vmatpush1.bf16.xpose.msra.mxu0 %v153
    %181 = vmatprep.subr.bf16.mxu0 0
    %182 = vmatpush1.bf16.xpose.msra.mxu0 %v150
    %183 = vmatprep.subr.bf16.mxu0 0
    %184 = vmatpush1.bf16.xpose.msra.mxu0 %v147
    %185 = vmatprep.subr.bf16.mxu0 0
    %186 = vmatpush1.bf16.xpose.msra.mxu0 %v144
    %187 = vmatprep.subr.bf16.mxu0 0
    %188 = vmatpush1.bf16.xpose.msra.mxu0 %v141
    %189 = vmatprep.subr.bf16.mxu0 0
    %190 = vmatpush1.bf16.xpose.msra.mxu0 %v138
    %191 = vmatprep.subr.bf16.mxu0 0
    %192 = vmatpush1.bf16.xpose.msra.mxu0 %v135
    %193 = vmatprep.subr.bf16.mxu0 0
    %194 = vmatpush1.bf16.xpose.msra.mxu0 %v132
    %195 = vmatprep.subr.bf16.mxu0 0
    %196 = vmatpush2.bf16.xpose.msra.mxu0 %v177
    %197 = vmatprep.subr.bf16.mxu0 0
    %198 = vmatpush2.bf16.xpose.msra.mxu0 %v174
    %199 = vmatprep.subr.bf16.mxu0 0
    %200 = vmatpush2.bf16.xpose.msra.mxu0 %v171
    %201 = vmatprep.subr.bf16.mxu0 0
    %202 = vmatpush2.bf16.xpose.msra.mxu0 %v168
    %203 = vmatprep.subr.bf16.mxu0 0
    %204 = vmatpush2.bf16.xpose.msra.mxu0 %v165
    %205 = vmatprep.subr.bf16.mxu0 0
    %206 = vmatpush2.bf16.xpose.msra.mxu0 %v162
    %207 = vmatprep.subr.bf16.mxu0 0
    %208 = vmatpush2.bf16.xpose.msra.mxu0 %v159
    %209 = vmatprep.subr.bf16.mxu0 0
    %210 = vmatpush2.bf16.xpose.msra.mxu0 %v156
    %211 = vmatprep.mubr.bf16.mxu0 0
    %212 = vmatmul.mubr.bf16.gmra.mxu0 %v129
    %v213 = vpop.f32.mrf.mxu0
    %v214 = vadd.f32 0.0, %v213
    %v215 = vpop.f32.mrf.mxu0
    %v216 = vadd.f32 0.0, %v215
    %v217 = vpop.f32.mrf.mxu0
    %v218 = vpop.f32.mrf.mxu0
    %219 = vdwg.mxu0
    %v220 = vmul.f32 %v214, 0.5
    %v221 = vmul.f32 %v216, 0.5
    %v222 = vmul.f32 %v220, 0.033333335
    %v223 = vmul.f32 %v221, 0.033333335
    %v224 = vtanh.pop %v222
    %v225 = vtanh.pop %v223
    %v226 = vmul.f32 %v224, 30.0
    %v227 = vmul.f32 %v225, 30.0
    %228 = vst [vmem:[#allocation2] sm:$0xff] %v226
    %229 = vst [vmem:[#allocation2 + $0x8] sm:$0xff] %v227
    // Predicated region
    $region10: #{tpu_custom_call.1} parent=1 // pred_check
      _
    $region11: #{tpu_custom_call.1} parent=1 // pred_check_branch
      %231 = sbr.rel (0) target = $region13
    $region12: #{tpu_custom_call.1} parent=1 // pred_region
      %s233 = ssub.s32 256, 256
      %234 = vsyncadd [#allocation3], %s233
      %s236 = sshll.u32 [#allocation2], 4
      %s237 = int_to_ptr.vmem [resolvable:$true] %s236
      %239 = dma.vmem_to_hbm [thread:$0]  %s237, 256, %s2, [#allocation3]
    $region13: #{tpu_custom_call.1} parent=1 // pred_fallthru
      _
    // Predicated region
    $region14: #{tpu_custom_call.1} parent=1 // pred_check
      _
    $region15: #{tpu_custom_call.1} parent=1 // pred_check_branch
      %241 = sbr.rel (0) target = $region17
    $region16: #{tpu_custom_call.1} parent=1 // pred_region
      %242 = dma.done [#allocation3], 256
    $region17: #{tpu_custom_call.1} parent=1 // pred_fallthru
      _
    %243 = vsyncpa [#allocation3], 1

</llo_original>
